<compile_context>
chip_gen: v7x
topology: tpu7x:2x2x1
jax: 0.10.0
libtpu: 0.0.40
codegen_flags: <defaults>
</compile_context>

<pallas_src>
import functools

import jax
import jax.numpy as jnp
from jax.experimental import pallas as pl
from jax.experimental.pallas import tpu as pltpu

_LANE = 128
_SUBLANE = 8


def _round_up(n, m):
    return ((n + m - 1) // m) * m


def _tile_and_pad(batch, block_m):
    """Pick a batch tile (multiple of 8) and the padded batch size."""
    tm = _round_up(min(block_m, _round_up(batch, _SUBLANE)), _SUBLANE)
    return tm, _round_up(batch, tm)


def _dropout_threshold(keep_prob):
    """int32 threshold t such that P(uniform_int32 < t) == keep_prob."""
    t = int(round(keep_prob * (1 << 32))) - (1 << 31)
    return max(min(t, (1 << 31) - 1), -(1 << 31))


def _make_dropout_rnd(key, shape):
    """Full-range uniform int32 bits, generated outside the kernel so the
    kernel also lowers under interpret mode (no pltpu.prng_seed on CPU)."""
    bits = jax.random.bits(key, shape, dtype=jnp.uint32)
    return jax.lax.bitcast_convert_type(bits, jnp.int32)


def _linear_kernel(x_ref, w_ref, b_ref, o_ref):
    # Eval mode: dropout is the identity -> bf16 matmul (f32 acc) + f32 bias.
    xb = x_ref[...].astype(jnp.bfloat16)
    acc = jnp.dot(xb, w_ref[...], preferred_element_type=jnp.float32)
    o_ref[...] = (acc + b_ref[...]).astype(o_ref.dtype)


def _dropout_linear_kernel(x_ref, rnd_ref, w_ref, b_ref, o_ref, *,
                           threshold, inv_keep):
    # Inverted dropout: keep iff int32 bits < threshold, scale by 1/keep_prob.
    keep = rnd_ref[...] < threshold
    scale = jnp.where(keep, jnp.float32(inv_keep), jnp.float32(0.0))
    xb = (x_ref[...] * scale).astype(jnp.bfloat16)
    acc = jnp.dot(xb, w_ref[...], preferred_element_type=jnp.float32)
    o_ref[...] = (acc + b_ref[...]).astype(o_ref.dtype)


def linear_model_timm_forward(x, w_t, b, *, dropout_rate=0.7, training=False,
                              rng_key=None, block_m=256):
    """Forward pass of LinearModelTimm.

    Args:
      x:   (batch, input_dim) float32
      w_t: (input_dim, num_classes) float32  (PyTorch weight transposed)
      b:   (num_classes,) float32
    Returns:
      (batch, num_classes) in x.dtype
    """
    B, D = x.shape
    D2, C = w_t.shape
    assert D == D2, "input_dim mismatch"
    assert 0.0 <= float(dropout_rate) < 1.0

    tm, Bp = _tile_and_pad(B, block_m)
    Cp = _round_up(C, _LANE)          # lane-dense output width

    x_p = x if Bp == B else jnp.pad(x, ((0, Bp - B), (0, 0)))
    w_p = jnp.pad(w_t, ((0, 0), (0, Cp - C))).astype(jnp.bfloat16)
    b_p = jnp.pad(b, (0, Cp - C)).astype(jnp.float32).reshape(1, Cp)

    grid = (Bp // tm,)
    x_spec = pl.BlockSpec((tm, D), lambda i: (i, 0))
    w_spec = pl.BlockSpec((D, Cp), lambda i: (0, 0))   # resident across grid
    b_spec = pl.BlockSpec((1, Cp), lambda i: (0, 0))   # resident across grid
    o_spec = pl.BlockSpec((tm, Cp), lambda i: (i, 0))
    out_shape = jax.ShapeDtypeStruct((Bp, Cp), x.dtype)

    use_dropout = training and float(dropout_rate) > 0.0

    # VMEM budget estimate: double-buffered streams (x[, rnd], out) + resident
    # weight/bias, with headroom; clamped to stay safe on v7x's 64 MiB VMEM.
    stream_bytes = tm * D * 4 * (2 if use_dropout else 1) + tm * Cp * 4
    resident_bytes = D * Cp * 2 + Cp * 4
    vmem_limit = int(min(max(3 * (2 * stream_bytes + resident_bytes), 32 << 20),
                         48 << 20))
    cparams = pltpu.CompilerParams(dimension_semantics=("parallel",),
                                   vmem_limit_bytes=vmem_limit)

    if not use_dropout:
        y = pl.pallas_call(
            _linear_kernel,
            grid=grid,
            in_specs=[x_spec, w_spec, b_spec],
            out_specs=o_spec,
            out_shape=out_shape,
            compiler_params=cparams,
        )(x_p, w_p, b_p)
    else:
        if rng_key is None:
            rng_key = jax.random.PRNGKey(0)
        keep_prob = 1.0 - float(dropout_rate)
        rnd = _make_dropout_rnd(rng_key, (Bp, D))
        kernel = functools.partial(
            _dropout_linear_kernel,
            threshold=_dropout_threshold(keep_prob),
            inv_keep=1.0 / keep_prob,
        )
        y = pl.pallas_call(
            kernel,
            grid=grid,
            in_specs=[x_spec, x_spec, w_spec, b_spec],  # rnd tiled like x
            out_specs=o_spec,
            out_shape=out_shape,
            compiler_params=cparams,
        )(x_p, rnd, w_p, b_p)

    return y[:B, :C]


if __name__ == "__main__":
    # Small, module-consistent shapes: batch=8, input_dim=128, num_classes=32.
    B, D, C = 8, 128, 32
    dropout_rate = 0.7
    key = jax.random.PRNGKey(0)
    kx, kw, kb, kdrop = jax.random.split(key, 4)

    x = jax.random.normal(kx, (B, D), dtype=jnp.float32)
    # PyTorch Linear layout is (out, in); the kernel consumes the transpose.
    w = jax.random.normal(kw, (C, D), dtype=jnp.float32) * 0.02
    b = jax.random.normal(kb, (C,), dtype=jnp.float32) * 0.01
    w_t = w.T  # (D, C)

    # ---- Eval mode (dropout == identity) -----------------------------------
    y_eval = linear_model_timm_forward(x, w_t, b, dropout_rate=dropout_rate,
                                       training=False)
    jax.block_until_ready(y_eval)
    y_ref = x @ w_t + b
    assert y_eval.shape == (B, C)
    assert jnp.allclose(y_eval, y_ref, atol=5e-2, rtol=5e-2), "eval-mode mismatch"

    # ---- Train mode (inverted dropout fused with the linear) ---------------
    y_train = linear_model_timm_forward(x, w_t, b, dropout_rate=dropout_rate,
                                        training=True, rng_key=kdrop)
    jax.block_until_ready(y_train)
    assert y_train.shape == (B, C)
    assert bool(jnp.isfinite(y_train).all())

    # Reference using the same mask bits the kernel consumed.
    keep_prob = 1.0 - dropout_rate
    tm, Bp = _tile_and_pad(B, 256)
    rnd = _make_dropout_rnd(kdrop, (Bp, D))[:B]
    mask = (rnd < _dropout_threshold(keep_prob)).astype(jnp.float32)
    y_train_ref = (x * mask * (1.0 / keep_prob)) @ w_t + b
    assert jnp.allclose(y_train, y_train_ref, atol=5e-2, rtol=5e-2), \
        "train-mode mismatch"

    print("KERNEL_OK")
</pallas_src>

<mosaic_0001>
module attributes {stable_mosaic.version = 11 : i64} {
  func.func @_linear_kernel(%arg0: i32, %arg1: memref<8x128xf32, #tpu.memory_space<vmem>>, %arg2: memref<128x128xbf16, #tpu.memory_space<vmem>>, %arg3: memref<1x128xf32, #tpu.memory_space<vmem>>, %arg4: memref<8x128xf32, #tpu.memory_space<vmem>>) attributes {dimension_semantics = [#tpu.dimension_semantics<parallel>], iteration_bounds = array<i64: 1>, scalar_prefetch = 0 : i64, scratch_operands = 0 : i64, tpu.core_type = #tpu.core_type<tc>, window_params = [{transform_indices = @transform_0, window_bounds = array<i64: 8, 128>}, {pipeline_mode = #tpu.pipeline_mode<synchronous>, transform_indices = @transform_1, window_bounds = array<i64: 128, 128>}, {pipeline_mode = #tpu.pipeline_mode<synchronous>, transform_indices = @transform_2, window_bounds = array<i64: 1, 128>}, {transform_indices = @transform_3, window_bounds = array<i64: 8, 128>}]} {
    %c0 = arith.constant 0 : index
    %c0_0 = arith.constant 0 : index
    %0 = vector.load %arg1[%c0, %c0_0] : memref<8x128xf32, #tpu.memory_space<vmem>>, vector<8x128xf32>
    %1 = arith.truncf %0 : vector<8x128xf32> to vector<8x128xbf16>
    %c0_1 = arith.constant 0 : index
    %c0_2 = arith.constant 0 : index
    %2 = vector.load %arg2[%c0_1, %c0_2] : memref<128x128xbf16, #tpu.memory_space<vmem>>, vector<128x128xbf16>
    %cst = arith.constant dense<0.000000e+00> : vector<8x128xf32>
    %3 = tpu.matmul %1, %2, %cst {dimension_numbers = #tpu.dot_dimension_numbers<[1], [0], [0], [1], [0, 0, 1, 1], [], []>} : vector<8x128xbf16>, vector<128x128xbf16>, vector<8x128xf32> -> vector<8x128xf32>
    %c0_3 = arith.constant 0 : index
    %c0_4 = arith.constant 0 : index
    %4 = vector.load %arg3[%c0_3, %c0_4] : memref<1x128xf32, #tpu.memory_space<vmem>>, vector<1x128xf32>
    %5 = vector.broadcast %4 : vector<1x128xf32> to vector<8x128xf32>
    %6 = arith.addf %3, %5 : vector<8x128xf32>
    %c0_5 = arith.constant 0 : index
    %c0_6 = arith.constant 0 : index
    %7 = vector.load %arg4[%c0_5, %c0_6] : memref<8x128xf32, #tpu.memory_space<vmem>>, vector<8x128xf32>
    tpu.vector_store %arg4[%c0_5, %c0_6], %6 {strides = array<i32>} : memref<8x128xf32, #tpu.memory_space<vmem>>, vector<8x128xf32>,
    return
  }
  func.func @transform_0(%arg0: i32) -> (i32, i32) {
    %c0_i32 = arith.constant 0 : i32
    %c0_i32_0 = arith.constant 0 : i32
    return %arg0, %c0_i32 : i32, i32
  }
  func.func @transform_1(%arg0: i32) -> (i32, i32) {
    %c0_i32 = arith.constant 0 : i32
    %c0_i32_0 = arith.constant 0 : i32
    %c0_i32_1 = arith.constant 0 : i32
    return %c0_i32, %c0_i32_0 : i32, i32
  }
  func.func @transform_2(%arg0: i32) -> (i32, i32) {
    %c0_i32 = arith.constant 0 : i32
    %c0_i32_0 = arith.constant 0 : i32
    %c0_i32_1 = arith.constant 0 : i32
    return %c0_i32, %c0_i32_0 : i32, i32
  }
  func.func @transform_3(%arg0: i32) -> (i32, i32) {
    %c0_i32 = arith.constant 0 : i32
    %c0_i32_0 = arith.constant 0 : i32
    return %arg0, %c0_i32 : i32, i32
  }
}

</mosaic_0001>

<llo_original>
// kernel: tpu_custom_call.1
$region0: #{tpu_custom_call.1}
  #allocation0 [shape = 'u32[]', space=smem, size = 0x4, offset = 0x4, fixed_abs, tag = 'smem constant byte address 0x4 - core index']
  #allocation1 [shape = 'u32[144,128]{1,0:T(1,128)}', space=vmem, size = 0x12000, scoped, tag = 'internal scratch']
  %s0 = inlined_call_operand.hbm [shape: f32[8,128], index: 0, kind: input, shape index: {}]
  %s1 = inlined_call_operand.hbm [shape: bf16[128,128], index: 1, kind: input, shape index: {}]
  %s2 = inlined_call_operand.vmem [shape: f32[1,128], index: 2, kind: input, shape index: {}]
  %s3 = inlined_call_operand.hbm [shape: f32[8,128], index: 3, kind: output, shape index: {}]
  %s4 = sld [smem:[#allocation0]]
  $region30: #{tpu_custom_call.1} parent=0
    _
  %s6 = ssub.s32 1, %s4
  %s7 = scalar_select 0, %s6, %s4
  $region1: #{tpu_custom_call.1} parent=0
    #allocation2 [shape = 'u8[4096]{0}', space=vmem, size = 0x1000, scoped, tag = 'input window, operand 0, single buffered']
    #allocation3 [shape = 's32[1]{0}', space=sflag, size = 0x4, scoped, tag = 'scoped memory for tpu_custom_call.1']
    #allocation4 [shape = 's32[1]{0}', space=sflag, size = 0x4, scoped, tag = 'scoped memory for tpu_custom_call.1']
    #allocation5 [shape = 'u8[32768]{0}', space=vmem, size = 0x8000, scoped, tag = 'input window, operand 1, single buffered']
    #allocation6 [shape = 's32[1]{0}', space=sflag, size = 0x4, scoped, tag = 'scoped memory for tpu_custom_call.1']
    #allocation7 [shape = 'u8[4096]{0}', space=vmem, size = 0x1000, scoped, tag = 'output window, operand 0, single buffered']
    %8 = vsyncpa [#allocation3], 0
    %9 = vsyncpa [#allocation6], 0
    %10 = vsyncpa [#allocation4], 0
    // Predicated region
    $region2: #{tpu_custom_call.1} parent=1 // pred_check
      _
    $region3: #{tpu_custom_call.1} parent=1 // pred_check_branch
      %12 = sbr.rel (0) target = $region5
    $region4: #{tpu_custom_call.1} parent=1 // pred_region
      %s14 = ssub.s32 128, 128
      %15 = vsyncadd [#allocation3], %s14
      %s17 = sshll.u32 [#allocation2], 4
      %s18 = int_to_ptr.vmem [resolvable:$true] %s17
      %20 = dma.hbm_to_vmem [thread:$0]  %s0, 128, %s18, [#allocation3]
    $region5: #{tpu_custom_call.1} parent=1 // pred_fallthru
      _
    // Predicated region
    $region6: #{tpu_custom_call.1} parent=1 // pred_check
      _
    $region7: #{tpu_custom_call.1} parent=1 // pred_check_branch
      %22 = sbr.rel (0) target = $region9
    $region8: #{tpu_custom_call.1} parent=1 // pred_region
      %s24 = ssub.s32 1024, 1024
      %25 = vsyncadd [#allocation6], %s24
      %s26 = sshll.u32 [#allocation5], 4
      %s27 = int_to_ptr.vmem [resolvable:$true] %s26
      %32 = dma.hbm_to_vmem [thread:$0]  %s1, 1024, %s27, [#allocation6], 64, 64, 4
    $region9: #{tpu_custom_call.1} parent=1 // pred_fallthru
      _
    // Predicated region
    $region10: #{tpu_custom_call.1} parent=1 // pred_check
      _
    $region11: #{tpu_custom_call.1} parent=1 // pred_check_branch
      %34 = sbr.rel (0) target = $region13
    $region12: #{tpu_custom_call.1} parent=1 // pred_region
      _
    $region13: #{tpu_custom_call.1} parent=1 // pred_fallthru
      _
    // Predicated region
    $region14: #{tpu_custom_call.1} parent=1 // pred_check
      _
    $region15: #{tpu_custom_call.1} parent=1 // pred_check_branch
      %36 = sbr.rel (0) target = $region17
    $region16: #{tpu_custom_call.1} parent=1 // pred_region
      %37 = dma.done [#allocation3], 128
    $region17: #{tpu_custom_call.1} parent=1 // pred_fallthru
      _
    // Predicated region
    $region18: #{tpu_custom_call.1} parent=1 // pred_check
      _
    $region19: #{tpu_custom_call.1} parent=1 // pred_check_branch
      %39 = sbr.rel (0) target = $region21
    $region20: #{tpu_custom_call.1} parent=1 // pred_region
      %40 = dma.done [#allocation6], 1024
    $region21: #{tpu_custom_call.1} parent=1 // pred_fallthru
      _
    %v42 = vld [vmem:[#allocation2] sm:$0xff]
    %v43 = vpack.c.bf16 %v42, %v42
    %v44 = vld [vmem:[#allocation5] sm:$0xf]
    %v45 = vld [vmem:[#allocation5 + $0x4] sm:$0xf]
    %v46 = vld [vmem:[#allocation5 + $0x8] sm:$0xf]
    %v47 = vld [vmem:[#allocation5 + $0xc] sm:$0xf]
    %v48 = vld [vmem:[#allocation5 + $0x10] sm:$0xf]
    %v49 = vld [vmem:[#allocation5 + $0x14] sm:$0xf]
    %v50 = vld [vmem:[#allocation5 + $0x18] sm:$0xf]
    %v51 = vld [vmem:[#allocation5 + $0x1c] sm:$0xf]
    %v52 = vld [vmem:[#allocation5 + $0x20] sm:$0xf]
    %v53 = vld [vmem:[#allocation5 + $0x24] sm:$0xf]
    %v54 = vld [vmem:[#allocation5 + $0x28] sm:$0xf]
    %v55 = vld [vmem:[#allocation5 + $0x2c] sm:$0xf]
    %v56 = vld [vmem:[#allocation5 + $0x30] sm:$0xf]
    %v57 = vld [vmem:[#allocation5 + $0x34] sm:$0xf]
    %v58 = vld [vmem:[#allocation5 + $0x38] sm:$0xf]
    %v59 = vld [vmem:[#allocation5 + $0x3c] sm:$0xf]
    %v60 = vld [vmem:[%s2] sm:$0x1]
    %v62 = vlaneseq
    %v63 = vshrl.u32 %v62, 7
    %v64 = vsub.s32 0, %v63
    %v65 = vrot.slane %v60, %v64
    %v83 = vunpack.c.l.b16 %v44
    %v84 = vunpack.c.l.b16 %v45
    %v85 = vunpack.c.l.b16 %v46
    %v86 = vunpack.c.l.b16 %v47
    %v87 = vunpack.c.l.b16 %v48
    %v88 = vunpack.c.l.b16 %v49
    %v89 = vunpack.c.l.b16 %v50
    %v90 = vunpack.c.l.b16 %v51
    %v91 = vunpack.c.l.b16 %v52
    %v92 = vunpack.c.l.b16 %v53
    %v93 = vunpack.c.l.b16 %v54
    %v94 = vunpack.c.l.b16 %v55
    %v95 = vunpack.c.l.b16 %v56
    %v96 = vunpack.c.l.b16 %v57
    %v97 = vunpack.c.l.b16 %v58
    %v98 = vunpack.c.l.b16 %v59
    %v99 = vpack.c.b16 %v84, %v83
    %v100 = vpack.c.b16 %v86, %v85
    %v101 = vpack.c.b16 %v88, %v87
    %v102 = vpack.c.b16 %v90, %v89
    %v103 = vpack.c.b16 %v92, %v91
    %v104 = vpack.c.b16 %v94, %v93
    %v105 = vpack.c.b16 %v96, %v95
    %v106 = vpack.c.b16 %v98, %v97
    %115 = vmatprep.subr.bf16.mxu0 0
    %116 = vmatpush1.bf16.msra.mxu0 %v99
    %117 = vmatprep.subr.bf16.mxu0 0
    %118 = vmatpush1.bf16.msra.mxu0 %v100
    %119 = vmatprep.subr.bf16.mxu0 0
    %120 = vmatpush1.bf16.msra.mxu0 %v101
    %121 = vmatprep.subr.bf16.mxu0 0
    %122 = vmatpush1.bf16.msra.mxu0 %v102
    %123 = vmatprep.subr.bf16.mxu0 0
    %124 = vmatpush1.bf16.msra.mxu0 %v103
    %125 = vmatprep.subr.bf16.mxu0 0
    %126 = vmatpush1.bf16.msra.mxu0 %v104
    %127 = vmatprep.subr.bf16.mxu0 0
    %128 = vmatpush1.bf16.msra.mxu0 %v105
    %129 = vmatprep.subr.bf16.mxu0 0
    %130 = vmatpush1.bf16.msra.mxu0 %v106
    %131 = vmatprep.subr.bf16.mxu0 0
    %132 = vmatpush1.bf16.msra.mxu0 0
    %133 = vmatprep.subr.bf16.mxu0 0
    %134 = vmatpush1.bf16.msra.mxu0 0
    %135 = vmatprep.subr.bf16.mxu0 0
    %136 = vmatpush1.bf16.msra.mxu0 0
    %137 = vmatprep.subr.bf16.mxu0 0
    %138 = vmatpush1.bf16.msra.mxu0 0
    %139 = vmatprep.subr.bf16.mxu0 0
    %140 = vmatpush1.bf16.msra.mxu0 0
    %141 = vmatprep.subr.bf16.mxu0 0
    %142 = vmatpush1.bf16.msra.mxu0 0
    %143 = vmatprep.subr.bf16.mxu0 0
    %144 = vmatpush1.bf16.msra.mxu0 0
    %145 = vmatprep.subr.bf16.mxu0 0
    %146 = vmatpush1.bf16.msra.mxu0 0
    %147 = vmatprep.mubr.bf16.mxu0 0
    %148 = vmatmul.mubr.bf16.gmra.mrb[0].mxu0 %v43
    %v149 = vpop.f32.mrb[0].mxu0
    %v150 = vadd.f32 %v65, %v149
    %v151 = vpop.f32.mrb[0].mxu0
    %v152 = vpop.f32.mrb[0].mxu0
    %v153 = vpop.f32.mrb[0].mxu0
    %154 = vdwg.mxu0
    %155 = vst [vmem:[#allocation7] sm:$0xff] %v150
    // Predicated region
    $region22: #{tpu_custom_call.1} parent=1 // pred_check
      _
    $region23: #{tpu_custom_call.1} parent=1 // pred_check_branch
      %157 = sbr.rel (0) target = $region25
    $region24: #{tpu_custom_call.1} parent=1 // pred_region
      %s159 = ssub.s32 128, 128
      %160 = vsyncadd [#allocation4], %s159
      %s162 = sshll.u32 [#allocation7], 4
      %s163 = int_to_ptr.vmem [resolvable:$true] %s162
      %165 = dma.vmem_to_hbm [thread:$0]  %s163, 128, %s3, [#allocation4]
    $region25: #{tpu_custom_call.1} parent=1 // pred_fallthru
      _
    // Predicated region
    $region26: #{tpu_custom_call.1} parent=1 // pred_check
      _
    $region27: #{tpu_custom_call.1} parent=1 // pred_check_branch
      %167 = sbr.rel (0) target = $region29
    $region28: #{tpu_custom_call.1} parent=1 // pred_region
      %168 = dma.done [#allocation4], 128
    $region29: #{tpu_custom_call.1} parent=1 // pred_fallthru
      _
    %169 = vsyncpa [#allocation3], 1
    %170 = vsyncpa [#allocation6], 1
    %171 = vsyncpa [#allocation4], 1

</llo_original>
